<compile_context>
chip_gen: v5e
topology: v5e:2x2
jax: 0.10.0
libtpu: 0.0.40
codegen_flags: <defaults>
</compile_context>

<pallas_src>
import functools

import jax
import jax.numpy as jnp
from jax.experimental import pallas as pl
from jax.experimental.pallas import tpu as pltpu  # noqa: F401  (TPU backend)

HIDDEN = 32
NUM_QUERY = 8
NUM_CLASSES = 16
CODE_SIZE = 8

# Fused head column layout (lane-padded to 32):
#   weights:  [0:16) cls | [16:24) reg | [24:27) 3-D ref-point logits | pad
#   output :  [0:16) cls | [16:24) reg | [24:26) projected 2-D point  | pad
CLS_OFF = 0
REG_OFF = NUM_CLASSES                 # 16
REF_OFF = NUM_CLASSES + CODE_SIZE     # 24
OUT_PAD = 32


def _fused_head_kernel(n_valid, batch,
                       x_ref, wp_ref, bp_ref, q_ref, wh_ref, bh_ref,
                       l2i_ref, invwh_ref, out_ref):
    """Whole forward pass (all batch elements) in one kernel invocation.

    x_ref:     (B, C, P_pad)  NCHW features, flattened spatial on the lane axis
    wp_ref:    (C, HIDDEN)    shared 1x1-conv projection weight
    bp_ref:    (1, HIDDEN)
    q_ref:     (Q, HIDDEN)    learned queries
    wh_ref:    (HIDDEN, 32)   fused cls|reg|ref weights
    bh_ref:    (1, 32)        fused biases
    l2i_ref:   (B, 4, 4)      lidar2img, pre-transposed
    invwh_ref: (1, 2)         (1/W, 1/H)
    out_ref:   (B*Q, 32)      packed cls|reg|ref2d slab
    """
    # --- 1x1-conv projection + global average pool ------------------------
    # Linearity: reduce over the spatial (lane) axis first, then project.
    x = x_ref[...]                                    # (B, C, P_pad), zero padded
    s = jnp.sum(x, axis=-1)                           # (B, C)
    pooled = (jnp.dot(s, wp_ref[...], preferred_element_type=jnp.float32)
              * (1.0 / n_valid) + bp_ref[...])        # (B, HIDDEN)

    # --- single fused head matmul -----------------------------------------
    # Rows [b*Q:(b+1)*Q] use feat = q + pooled[b]; the trailing Q rows use the
    # raw queries (for the batch-independent 3-D reference points).
    q = q_ref[...]                                    # (Q, HIDDEN)
    rows = [q + pooled[b:b + 1, :] for b in range(batch)] + [q]
    stacked = jnp.concatenate(rows, axis=0)           # ((B+1)*Q, HIDDEN)
    head = (jnp.dot(stacked, wh_ref[...], preferred_element_type=jnp.float32)
            + bh_ref[...])                            # ((B+1)*Q, 32)

    # 3-D reference points from the queries only, squashed to [0, 1].
    ref3d = jax.nn.sigmoid(head[batch * NUM_QUERY:, REF_OFF:REF_OFF + 3])  # (Q, 3)

    inv_wh = invwh_ref[...]                           # (1, 2)
    zero_pad = jnp.zeros((NUM_QUERY, OUT_PAD - (REF_OFF + 2)), jnp.float32)

    pieces = []
    for b in range(batch):                            # static unroll, B is tiny
        # proj = [ref3d, 1] @ lidar2img^T  (lidar2img passed pre-transposed):
        #   proj = ref3d @ l2iT[:3] + l2iT[3]
        l2iT = l2i_ref[b]                             # (4, 4)
        proj = (jnp.dot(ref3d, l2iT[0:3, :], preferred_element_type=jnp.float32)
                + l2iT[3:4, :])                       # (Q, 4)
        # TODO(synk): points behind the camera (z <= 0) are clamped rather than
        # masked, matching the previous reference head, not full DETR3D.
        z = jnp.maximum(proj[:, 2:3], 1e-5)
        xy = proj[:, 0:2] * pl.reciprocal(z, approx=True) * inv_wh   # (Q, 2)
        pieces.append(jnp.concatenate(
            [head[b * NUM_QUERY:(b + 1) * NUM_QUERY, 0:REF_OFF], xy, zero_pad],
            axis=-1))                                 # (Q, 32)

    out_ref[...] = jnp.concatenate(pieces, axis=0)    # one dense (B*Q, 32) store


def init_params(key, in_channels):
    ks = jax.random.split(key, 5)
    p = {}
    p["w_proj"] = 0.1 * jax.random.normal(ks[0], (in_channels, HIDDEN), jnp.float32)
    p["b_proj"] = jnp.zeros((1, HIDDEN), jnp.float32)
    p["queries"] = 0.1 * jax.random.normal(ks[1], (NUM_QUERY, HIDDEN), jnp.float32)

    w_cls = 0.1 * jax.random.normal(ks[2], (HIDDEN, NUM_CLASSES), jnp.float32)
    w_reg = 0.1 * jax.random.normal(ks[3], (HIDDEN, CODE_SIZE), jnp.float32)
    w_ref = 0.1 * jax.random.normal(ks[4], (HIDDEN, 3), jnp.float32)

    # Fuse the three head projections into one lane-padded weight/bias.
    w_head = jnp.zeros((HIDDEN, OUT_PAD), jnp.float32)
    w_head = w_head.at[:, CLS_OFF:CLS_OFF + NUM_CLASSES].set(w_cls)
    w_head = w_head.at[:, REG_OFF:REG_OFF + CODE_SIZE].set(w_reg)
    w_head = w_head.at[:, REF_OFF:REF_OFF + 3].set(w_ref)
    p["w_head"] = w_head
    p["b_head"] = jnp.zeros((1, OUT_PAD), jnp.float32)   # cls/reg/ref biases (zero init)
    return p


def helper_model_head(t1, t2, t3, t4, lidar2img, img_shape, params):
    """Mirrors HelperModelHead.forward(t1, t2, t3, t4, lidar2img, img_shape).

    img_metas construction in the PyTorch wrapper is pure Python metadata
    plumbing: lidar2img and img_shape are threaded straight into the head.
    """
    # TODO(synk): the wrapped `self.model` is opaque in the reference code; a
    # representative DETR3D-style multi-scale head is implemented here.
    B, C = t1.shape[0], t1.shape[1]

    # Keep native NCHW: flatten H*W per level, concatenate on the (lane) spatial
    # axis, pad to a multiple of 128 lanes with zeros.
    feats = [t.reshape(t.shape[0], t.shape[1], -1) for t in (t1, t2, t3, t4)]
    x = jnp.concatenate(feats, axis=-1)                 # (B, C, P)
    p_total = x.shape[-1]
    p_pad = ((p_total + 127) // 128) * 128
    if p_pad != p_total:
        x = jnp.pad(x, ((0, 0), (0, 0), (0, p_pad - p_total)))

    # Pre-transpose lidar2img so the kernel uses only row-major matmuls.
    l2i_t = jnp.swapaxes(lidar2img.astype(jnp.float32), -1, -2)      # (B, 4, 4)
    # img_shape arrives as (H, W); projected points are normalized by (W, H).
    inv_wh = jnp.array([[1.0 / float(img_shape[1]), 1.0 / float(img_shape[0])]],
                       jnp.float32)                                   # (1, 2)

    # Single fused pallas_call, no grid: the whole (tiny) batch lives in VMEM.
    slab = pl.pallas_call(
        functools.partial(_fused_head_kernel, float(p_total), B),
        out_shape=jax.ShapeDtypeStruct((B * NUM_QUERY, OUT_PAD), jnp.float32),
    )(x, params["w_proj"], params["b_proj"], params["queries"],
      params["w_head"], params["b_head"], l2i_t, inv_wh)

    slab = slab.reshape(B, NUM_QUERY, OUT_PAD)
    return {"cls_scores": slab[..., CLS_OFF:CLS_OFF + NUM_CLASSES],
            "bbox_preds": slab[..., REG_OFF:REG_OFF + CODE_SIZE],
            "ref_points_2d": slab[..., REF_OFF:REF_OFF + 2]}


if __name__ == "__main__":
    key = jax.random.PRNGKey(0)
    k_t1, k_t2, k_t3, k_t4, k_l2i, k_par = jax.random.split(key, 6)

    B, C = 2, 4
    t1 = jax.random.normal(k_t1, (B, C, 16, 16), jnp.float32)
    t2 = jax.random.normal(k_t2, (B, C, 8, 8), jnp.float32)
    t3 = jax.random.normal(k_t3, (B, C, 4, 4), jnp.float32)
    t4 = jax.random.normal(k_t4, (B, C, 2, 2), jnp.float32)

    # A plausible camera projection matrix per batch element.
    base = jnp.array([[120.0, 0.0, 80.0, 1.0],
                      [0.0, 120.0, 64.0, 1.0],
                      [0.0, 0.0, 1.0, 0.0],
                      [0.0, 0.0, 0.0, 1.0]], jnp.float32)
    lidar2img = base[None] + 0.01 * jax.random.normal(k_l2i, (B, 4, 4), jnp.float32)
    img_shape = (128, 160)   # (H, W)

    params = init_params(k_par, C)

    out = helper_model_head(t1, t2, t3, t4, lidar2img, img_shape, params)
    out = jax.tree_util.tree_map(jax.block_until_ready, out)

    assert out["cls_scores"].shape == (B, NUM_QUERY, NUM_CLASSES)
    assert out["bbox_preds"].shape == (B, NUM_QUERY, CODE_SIZE)
    assert out["ref_points_2d"].shape == (B, NUM_QUERY, 2)
    assert all(bool(jnp.all(jnp.isfinite(v))) for v in out.values())
    print("KERNEL_OK")
</pallas_src>

<mosaic_0001>
module attributes {stable_mosaic.version = 11 : i64} {
  func.func @_fused_head_kernel(%arg0: memref<2x4x384xf32, #tpu.memory_space<vmem>>, %arg1: memref<4x32xf32, #tpu.memory_space<vmem>>, %arg2: memref<1x32xf32, #tpu.memory_space<vmem>>, %arg3: memref<8x32xf32, #tpu.memory_space<vmem>>, %arg4: memref<32x32xf32, #tpu.memory_space<vmem>>, %arg5: memref<1x32xf32, #tpu.memory_space<vmem>>, %arg6: memref<2x4x4xf32, #tpu.memory_space<vmem>>, %arg7: memref<1x2xf32, #tpu.memory_space<vmem>>, %arg8: memref<16x32xf32, #tpu.memory_space<vmem>>) attributes {dimension_semantics = [], scalar_prefetch = 0 : i64, scratch_operands = 0 : i64, tpu.core_type = #tpu.core_type<tc>} {
    %c0 = arith.constant 0 : index
    %c0_0 = arith.constant 0 : index
    %c0_1 = arith.constant 0 : index
    %0 = vector.load %arg0[%c0, %c0_0, %c0_1] : memref<2x4x384xf32, #tpu.memory_space<vmem>>, vector<2x4x384xf32>
    %cst = arith.constant dense<0.000000e+00> : vector<2x4xf32>
    %1 = vector.multi_reduction <add>, %0, %cst [2] : vector<2x4x384xf32> to vector<2x4xf32>
    %c0_2 = arith.constant 0 : index
    %c0_3 = arith.constant 0 : index
    %2 = vector.load %arg1[%c0_2, %c0_3] : memref<4x32xf32, #tpu.memory_space<vmem>>, vector<4x32xf32>
    %cst_4 = arith.constant dense<0.000000e+00> : vector<2x32xf32>
    %3 = tpu.matmul %1, %2, %cst_4 {dimension_numbers = #tpu.dot_dimension_numbers<[1], [0], [0], [1], [0, 0, 1, 1], [], []>} : vector<2x4xf32>, vector<4x32xf32>, vector<2x32xf32> -> vector<2x32xf32>
    %cst_5 = arith.constant 0.00294117653 : f32
    %4 = vector.broadcast %cst_5 : f32 to vector<2x32xf32>
    %5 = arith.mulf %3, %4 : vector<2x32xf32>
    %c0_6 = arith.constant 0 : index
    %c0_7 = arith.constant 0 : index
    %6 = vector.load %arg2[%c0_6, %c0_7] : memref<1x32xf32, #tpu.memory_space<vmem>>, vector<1x32xf32>
    %7 = vector.broadcast %6 : vector<1x32xf32> to vector<2x32xf32>
    %8 = arith.addf %5, %7 : vector<2x32xf32>
    %c0_8 = arith.constant 0 : index
    %c0_9 = arith.constant 0 : index
    %9 = vector.load %arg3[%c0_8, %c0_9] : memref<8x32xf32, #tpu.memory_space<vmem>>, vector<8x32xf32>
    %10 = vector.extract_strided_slice %8 {offsets = [0, 0], sizes = [1, 32], strides = [1, 1]} : vector<2x32xf32> to vector<1x32xf32>
    %11 = vector.broadcast %10 : vector<1x32xf32> to vector<8x32xf32>
    %12 = arith.addf %9, %11 : vector<8x32xf32>
    %13 = vector.extract_strided_slice %8 {offsets = [1, 0], sizes = [1, 32], strides = [1, 1]} : vector<2x32xf32> to vector<1x32xf32>
    %14 = vector.broadcast %13 : vector<1x32xf32> to vector<8x32xf32>
    %15 = arith.addf %9, %14 : vector<8x32xf32>
    %16 = tpu.concatenate %12, %15, %9 in 0 : vector<8x32xf32>, vector<8x32xf32>, vector<8x32xf32> -> vector<24x32xf32>
    %c0_10 = arith.constant 0 : index
    %c0_11 = arith.constant 0 : index
    %17 = vector.load %arg4[%c0_10, %c0_11] : memref<32x32xf32, #tpu.memory_space<vmem>>, vector<32x32xf32>
    %cst_12 = arith.constant dense<0.000000e+00> : vector<24x32xf32>
    %18 = tpu.matmul %16, %17, %cst_12 {dimension_numbers = #tpu.dot_dimension_numbers<[1], [0], [0], [1], [0, 0, 1, 1], [], []>} : vector<24x32xf32>, vector<32x32xf32>, vector<24x32xf32> -> vector<24x32xf32>
    %c0_13 = arith.constant 0 : index
    %c0_14 = arith.constant 0 : index
    %19 = vector.load %arg5[%c0_13, %c0_14] : memref<1x32xf32, #tpu.memory_space<vmem>>, vector<1x32xf32>
    %20 = vector.broadcast %19 : vector<1x32xf32> to vector<24x32xf32>
    %21 = arith.addf %18, %20 : vector<24x32xf32>
    %22 = vector.extract_strided_slice %21 {offsets = [16, 24], sizes = [8, 3], strides = [1, 1]} : vector<24x32xf32> to vector<8x3xf32>
    %23 = arith.negf %22 : vector<8x3xf32>
    %24 = math.exp %23 : vector<8x3xf32>
    %cst_15 = arith.constant 1.000000e+00 : f32
    %25 = vector.broadcast %cst_15 : f32 to vector<8x3xf32>
    %26 = arith.addf %25, %24 : vector<8x3xf32>
    %27 = arith.divf %25, %26 : vector<8x3xf32>
    %c0_16 = arith.constant 0 : index
    %c0_17 = arith.constant 0 : index
    %28 = vector.load %arg7[%c0_16, %c0_17] : memref<1x2xf32, #tpu.memory_space<vmem>>, vector<1x2xf32>
    %cst_18 = arith.constant 0.000000e+00 : f32
    %29 = vector.broadcast %cst_18 : f32 to vector<8x6xf32>
    %c0_19 = arith.constant 0 : index
    %c0_20 = arith.constant 0 : index
    %c0_21 = arith.constant 0 : index
    %30 = vector.load %arg6[%c0_19, %c0_20, %c0_21] : memref<2x4x4xf32, #tpu.memory_space<vmem>>, vector<1x4x4xf32>
    %31 = vector.shape_cast %30 : vector<1x4x4xf32> to vector<4x4xf32>
    %32 = vector.extract_strided_slice %31 {offsets = [0, 0], sizes = [3, 4], strides = [1, 1]} : vector<4x4xf32> to vector<3x4xf32>
    %cst_22 = arith.constant dense<0.000000e+00> : vector<8x4xf32>
    %33 = tpu.matmul %27, %32, %cst_22 {dimension_numbers = #tpu.dot_dimension_numbers<[1], [0], [0], [1], [0, 0, 1, 1], [], []>} : vector<8x3xf32>, vector<3x4xf32>, vector<8x4xf32> -> vector<8x4xf32>
    %34 = vector.extract_strided_slice %31 {offsets = [3, 0], sizes = [1, 4], strides = [1, 1]} : vector<4x4xf32> to vector<1x4xf32>
    %35 = vector.broadcast %34 : vector<1x4xf32> to vector<8x4xf32>
    %36 = arith.addf %33, %35 : vector<8x4xf32>
    %37 = vector.extract_strided_slice %36 {offsets = [0, 2], sizes = [8, 1], strides = [1, 1]} : vector<8x4xf32> to vector<8x1xf32>
    %cst_23 = arith.constant 9.99999974E-6 : f32
    %38 = vector.broadcast %cst_23 : f32 to vector<8x1xf32>
    %39 = arith.maximumf %37, %38 : vector<8x1xf32>
    %40 = vector.extract_strided_slice %36 {offsets = [0, 0], sizes = [8, 2], strides = [1, 1]} : vector<8x4xf32> to vector<8x2xf32>
    %41 = tpu.reciprocal %39 {approx = true} : vector<8x1xf32> -> vector<8x1xf32>
    %42 = vector.broadcast %41 : vector<8x1xf32> to vector<8x2xf32>
    %43 = arith.mulf %40, %42 : vector<8x2xf32>
    %44 = vector.broadcast %28 : vector<1x2xf32> to vector<8x2xf32>
    %45 = arith.mulf %43, %44 : vector<8x2xf32>
    %46 = vector.extract_strided_slice %21 {offsets = [0, 0], sizes = [8, 24], strides = [1, 1]} : vector<24x32xf32> to vector<8x24xf32>
    %47 = tpu.concatenate %46, %45, %29 in 1 : vector<8x24xf32>, vector<8x2xf32>, vector<8x6xf32> -> vector<8x32xf32>
    %c1 = arith.constant 1 : index
    %c0_24 = arith.constant 0 : index
    %c0_25 = arith.constant 0 : index
    %48 = vector.load %arg6[%c1, %c0_24, %c0_25] : memref<2x4x4xf32, #tpu.memory_space<vmem>>, vector<1x4x4xf32>
    %49 = vector.shape_cast %48 : vector<1x4x4xf32> to vector<4x4xf32>
    %50 = vector.extract_strided_slice %49 {offsets = [0, 0], sizes = [3, 4], strides = [1, 1]} : vector<4x4xf32> to vector<3x4xf32>
    %cst_26 = arith.constant dense<0.000000e+00> : vector<8x4xf32>
    %51 = tpu.matmul %27, %50, %cst_26 {dimension_numbers = #tpu.dot_dimension_numbers<[1], [0], [0], [1], [0, 0, 1, 1], [], []>} : vector<8x3xf32>, vector<3x4xf32>, vector<8x4xf32> -> vector<8x4xf32>
    %52 = vector.extract_strided_slice %49 {offsets = [3, 0], sizes = [1, 4], strides = [1, 1]} : vector<4x4xf32> to vector<1x4xf32>
    %53 = vector.broadcast %52 : vector<1x4xf32> to vector<8x4xf32>
    %54 = arith.addf %51, %53 : vector<8x4xf32>
    %55 = vector.extract_strided_slice %54 {offsets = [0, 2], sizes = [8, 1], strides = [1, 1]} : vector<8x4xf32> to vector<8x1xf32>
    %cst_27 = arith.constant 9.99999974E-6 : f32
    %56 = vector.broadcast %cst_27 : f32 to vector<8x1xf32>
    %57 = arith.maximumf %55, %56 : vector<8x1xf32>
    %58 = vector.extract_strided_slice %54 {offsets = [0, 0], sizes = [8, 2], strides = [1, 1]} : vector<8x4xf32> to vector<8x2xf32>
    %59 = tpu.reciprocal %57 {approx = true} : vector<8x1xf32> -> vector<8x1xf32>
    %60 = vector.broadcast %59 : vector<8x1xf32> to vector<8x2xf32>
    %61 = arith.mulf %58, %60 : vector<8x2xf32>
    %62 = vector.broadcast %28 : vector<1x2xf32> to vector<8x2xf32>
    %63 = arith.mulf %61, %62 : vector<8x2xf32>
    %64 = vector.extract_strided_slice %21 {offsets = [8, 0], sizes = [8, 24], strides = [1, 1]} : vector<24x32xf32> to vector<8x24xf32>
    %65 = tpu.concatenate %64, %63, %29 in 1 : vector<8x24xf32>, vector<8x2xf32>, vector<8x6xf32> -> vector<8x32xf32>
    %66 = tpu.concatenate %47, %65 in 0 : vector<8x32xf32>, vector<8x32xf32> -> vector<16x32xf32>
    %c0_28 = arith.constant 0 : index
    %c0_29 = arith.constant 0 : index
    %67 = vector.load %arg8[%c0_28, %c0_29] : memref<16x32xf32, #tpu.memory_space<vmem>>, vector<16x32xf32>
    tpu.vector_store %arg8[%c0_28, %c0_29], %66 {strides = array<i32>} : memref<16x32xf32, #tpu.memory_space<vmem>>, vector<16x32xf32>,
    return
  }
}

</mosaic_0001>

<llo_original>
// kernel: tpu_custom_call.1
$region0: #{tpu_custom_call.1}
  #allocation0 [shape = 'u32[]', space=smem, size = 0x4, offset = 0x4, fixed_abs, tag = 'smem constant byte address 0x4 - core index']
  #allocation1 [shape = 'u32[72,128]{1,0:T(1,128)}', space=vmem, size = 0x9000, scoped, tag = 'internal scratch']
  %s0 = inlined_call_operand.hbm [shape: f32[2,4,384], index: 0, kind: input, shape index: {}]
  %s1 = inlined_call_operand.hbm [shape: f32[4,32], index: 1, kind: input, shape index: {}]
  %s2 = inlined_call_operand.vmem [shape: f32[1,32], index: 2, kind: input, shape index: {}]
  %s3 = inlined_call_operand.hbm [shape: f32[8,32], index: 3, kind: input, shape index: {}]
  %s4 = inlined_call_operand.hbm [shape: f32[32,32], index: 4, kind: input, shape index: {}]
  %s5 = inlined_call_operand.vmem [shape: f32[1,32], index: 5, kind: input, shape index: {}]
  %s6 = inlined_call_operand.hbm [shape: f32[2,4,4], index: 6, kind: input, shape index: {}]
  %s7 = inlined_call_operand.vmem [shape: f32[1,2], index: 7, kind: input, shape index: {}]
  %s8 = inlined_call_operand.hbm [shape: f32[16,32], index: 8, kind: output, shape index: {}]
  %s9 = sld [smem:[#allocation0]]
  $region62: #{tpu_custom_call.1} parent=0
    _
  %s11 = ssub.s32 1, %s9
  %s12 = scalar_select 0, %s11, %s9
  $region1: #{tpu_custom_call.1} parent=0
    #allocation2 [shape = 'u8[12288]{0}', space=vmem, size = 0x3000, scoped, tag = 'input window, operand 0, single buffered']
    #allocation3 [shape = 's32[1]{0}', space=sflag, size = 0x4, scoped, tag = 'scoped memory for tpu_custom_call.1']
    #allocation4 [shape = 's32[1]{0}', space=sflag, size = 0x4, scoped, tag = 'scoped memory for tpu_custom_call.1']
    #allocation5 [shape = 'u8[2048]{0}', space=vmem, size = 0x800, scoped, tag = 'input window, operand 1, single buffered']
    #allocation6 [shape = 's32[1]{0}', space=sflag, size = 0x4, scoped, tag = 'scoped memory for tpu_custom_call.1']
    #allocation7 [shape = 'u8[4096]{0}', space=vmem, size = 0x1000, scoped, tag = 'input window, operand 3, single buffered']
    #allocation8 [shape = 'u8[16384]{0}', space=vmem, size = 0x4000, scoped, tag = 'input window, operand 4, single buffered']
    #allocation9 [shape = 's32[1]{0}', space=sflag, size = 0x4, scoped, tag = 'scoped memory for tpu_custom_call.1']
    #allocation10 [shape = 'u8[4096]{0}', space=vmem, size = 0x1000, scoped, tag = 'input window, operand 6, single buffered']
    #allocation11 [shape = 'u8[8192]{0}', space=vmem, size = 0x2000, scoped, tag = 'output window, operand 0, single buffered']
    %13 = vsyncpa [#allocation3], 0
    %14 = vsyncpa [#allocation6], 0
    %15 = vsyncpa [#allocation9], 0
    %16 = vsyncpa [#allocation4], 0
    // Predicated region
    $region2: #{tpu_custom_call.1} parent=1 // pred_check
      _
    $region3: #{tpu_custom_call.1} parent=1 // pred_check_branch
      %18 = sbr.rel (0) target = $region5
    $region4: #{tpu_custom_call.1} parent=1 // pred_region
      %20 = vsyncadd [#allocation3], 0
      %s21 = sshll.u32 %s0, 4
      %s22 = int_to_ptr.hbm [resolvable:$true] %s21
      %s23 = sshll.u32 [#allocation2], 4
      %s24 = int_to_ptr.vmem [resolvable:$true] %s23
      %29 = dma.hbm_to_vmem [thread:$0]  %s22, 384, %s24, [#allocation3], 192, 192, 12
    $region5: #{tpu_custom_call.1} parent=1 // pred_fallthru
      _
    // Predicated region
    $region6: #{tpu_custom_call.1} parent=1 // pred_check
      _
    $region7: #{tpu_custom_call.1} parent=1 // pred_check_branch
      %31 = sbr.rel (0) target = $region9
    $region8: #{tpu_custom_call.1} parent=1 // pred_region
      %33 = vsyncadd [#allocation6], 0
      %s35 = sshll.u32 %s1, 4
      %s36 = int_to_ptr.hbm [resolvable:$true] %s35
      %s37 = sshll.u32 [#allocation5], 4
      %s38 = int_to_ptr.vmem [resolvable:$true] %s37
      %40 = dma.hbm_to_vmem [thread:$0]  %s36, 64, %s38, [#allocation6]
    $region9: #{tpu_custom_call.1} parent=1 // pred_fallthru
      _
    // Predicated region
    $region10: #{tpu_custom_call.1} parent=1 // pred_check
      _
    $region11: #{tpu_custom_call.1} parent=1 // pred_check_branch
      %42 = sbr.rel (0) target = $region13
    $region12: #{tpu_custom_call.1} parent=1 // pred_region
      _
    $region13: #{tpu_custom_call.1} parent=1 // pred_fallthru
      _
    // Predicated region
    $region14: #{tpu_custom_call.1} parent=1 // pred_check
      _
    $region15: #{tpu_custom_call.1} parent=1 // pred_check_branch
      %44 = sbr.rel (0) target = $region17
    $region16: #{tpu_custom_call.1} parent=1 // pred_region
      %46 = vsyncadd [#allocation6], 0
      %s48 = sshll.u32 %s3, 4
      %s49 = int_to_ptr.hbm [resolvable:$true] %s48
      %s50 = sshll.u32 [#allocation7], 4
      %s51 = int_to_ptr.vmem [resolvable:$true] %s50
      %53 = dma.hbm_to_vmem [thread:$0]  %s49, 128, %s51, [#allocation6]
    $region17: #{tpu_custom_call.1} parent=1 // pred_fallthru
      _
    // Predicated region
    $region18: #{tpu_custom_call.1} parent=1 // pred_check
      _
    $region19: #{tpu_custom_call.1} parent=1 // pred_check_branch
      %55 = sbr.rel (0) target = $region21
    $region20: #{tpu_custom_call.1} parent=1 // pred_region
      %57 = vsyncadd [#allocation9], 0
      %s58 = sshll.u32 %s4, 4
      %s59 = int_to_ptr.hbm [resolvable:$true] %s58
      %s60 = sshll.u32 [#allocation8], 4
      %s61 = int_to_ptr.vmem [resolvable:$true] %s60
      %66 = dma.hbm_to_vmem [thread:$0]  %s59, 512, %s61, [#allocation9], 128, 128, 8
    $region21: #{tpu_custom_call.1} parent=1 // pred_fallthru
      _
    // Predicated region
    $region22: #{tpu_custom_call.1} parent=1 // pred_check
      _
    $region23: #{tpu_custom_call.1} parent=1 // pred_check_branch
      %68 = sbr.rel (0) target = $region25
    $region24: #{tpu_custom_call.1} parent=1 // pred_region
      _
    $region25: #{tpu_custom_call.1} parent=1 // pred_fallthru
      _
    // Predicated region
    $region26: #{tpu_custom_call.1} parent=1 // pred_check
      _
    $region27: #{tpu_custom_call.1} parent=1 // pred_check_branch
      %70 = sbr.rel (0) target = $region29
    $region28: #{tpu_custom_call.1} parent=1 // pred_region
      %72 = vsyncadd [#allocation9], 0
      %s73 = sshll.u32 %s6, 4
      %s74 = int_to_ptr.hbm [resolvable:$true] %s73
      %s75 = sshll.u32 [#allocation10], 4
      %s76 = int_to_ptr.vmem [resolvable:$true] %s75
      %81 = dma.hbm_to_vmem [thread:$0]  %s74, 128, %s76, [#allocation9], 64, 64, 4
    $region29: #{tpu_custom_call.1} parent=1 // pred_fallthru
      _
    // Predicated region
    $region30: #{tpu_custom_call.1} parent=1 // pred_check
      _
    $region31: #{tpu_custom_call.1} parent=1 // pred_check_branch
      %83 = sbr.rel (0) target = $region33
    $region32: #{tpu_custom_call.1} parent=1 // pred_region
      _
    $region33: #{tpu_custom_call.1} parent=1 // pred_fallthru
      _
    // Predicated region
    $region34: #{tpu_custom_call.1} parent=1 // pred_check
      _
    $region35: #{tpu_custom_call.1} parent=1 // pred_check_branch
      %85 = sbr.rel (0) target = $region37
    $region36: #{tpu_custom_call.1} parent=1 // pred_region
      %87 = dma.done [#allocation3], 384
    $region37: #{tpu_custom_call.1} parent=1 // pred_fallthru
      _
    // Predicated region
    $region38: #{tpu_custom_call.1} parent=1 // pred_check
      _
    $region39: #{tpu_custom_call.1} parent=1 // pred_check_branch
      %89 = sbr.rel (0) target = $region41
    $region40: #{tpu_custom_call.1} parent=1 // pred_region
      %91 = dma.done [#allocation6], 64
    $region41: #{tpu_custom_call.1} parent=1 // pred_fallthru
      _
    // Predicated region
    $region42: #{tpu_custom_call.1} parent=1 // pred_check
      _
    $region43: #{tpu_custom_call.1} parent=1 // pred_check_branch
      %93 = sbr.rel (0) target = $region45
    $region44: #{tpu_custom_call.1} parent=1 // pred_region
      %95 = dma.done [#allocation6], 128
    $region45: #{tpu_custom_call.1} parent=1 // pred_fallthru
      _
    // Predicated region
    $region46: #{tpu_custom_call.1} parent=1 // pred_check
      _
    $region47: #{tpu_custom_call.1} parent=1 // pred_check_branch
      %97 = sbr.rel (0) target = $region49
    $region48: #{tpu_custom_call.1} parent=1 // pred_region
      %99 = dma.done [#allocation9], 512
    $region49: #{tpu_custom_call.1} parent=1 // pred_fallthru
      _
    // Predicated region
    $region50: #{tpu_custom_call.1} parent=1 // pred_check
      _
    $region51: #{tpu_custom_call.1} parent=1 // pred_check_branch
      %101 = sbr.rel (0) target = $region53
    $region52: #{tpu_custom_call.1} parent=1 // pred_region
      %103 = dma.done [#allocation9], 128
    $region53: #{tpu_custom_call.1} parent=1 // pred_fallthru
      _
    %v104 = vld [vmem:[#allocation2] sm:$0xff]
    %v105 = vld [vmem:[#allocation2 + $0x8] sm:$0xf]
    %v106 = vld [vmem:[#allocation2 + $0xc] sm:$0xff]
    %v107 = vld [vmem:[#allocation2 + $0x14] sm:$0xf]
    %112 = vst [vmem:[#allocation1] ss:$2 sm:$0xff] %v104
    %s113 = scalar_lea.vmem [#allocation1], 16
    %114 = vst [vmem:[%s113] ss:$2 sm:$0xff] %v105
    %v115 = vld.sshfl [vmem:[#allocation1] sm:$0xff pattern:$0x75316420]
    %v116 = vld.sshfl [vmem:[#allocation1 + $0x8] sm:$0xff pattern:$0x75316420]
    %v117 = vld.sshfl [vmem:[#allocation1 + $0x10] sm:$0xff pattern:$0x75316420]
    %s118 = scalar_lea.vmem [#allocation1], 32
    %119 = vst [vmem:[%s118] ss:$2 sm:$0xff] %v106
    %s120 = scalar_lea.vmem [#allocation1], 48
    %121 = vst [vmem:[%s120] ss:$2 sm:$0xff] %v107
    %v122 = vld.sshfl [vmem:[#allocation1 + $0x20] sm:$0xff pattern:$0x75316420]
    %v123 = vld.sshfl [vmem:[#allocation1 + $0x28] sm:$0xff pattern:$0x75316420]
    %v124 = vld.sshfl [vmem:[#allocation1 + $0x30] sm:$0xff pattern:$0x75316420]
    %vm131 = vcmask 1043456
    %v132 = vsel %vm131, %v115, 0.0
    %v133 = vsel %vm131, %v116, 0.0
    %v134 = vadd.f32 %v132, %v133
    %v135 = vsel %vm131, %v117, 0.0
    %v136 = vadd.f32 %v134, %v135
    %137 = vadd.xlane.f32.xlu0 %v136
    %v138 = vpop.xlane.xlu0 %137
    %v139 = vsel %vm131, %v122, 0.0
    %v140 = vsel %vm131, %v123, 0.0
    %v141 = vadd.f32 %v139, %v140
    %v142 = vsel %vm131, %v124, 0.0
    %v143 = vadd.f32 %v141, %v142
    %144 = vadd.xlane.f32.xlu0 %v143
    %v145 = vpop.xlane.xlu0 %144
    %v146 = vld [vmem:[#allocation5] sm:$0xf]
    %v149 = vlaneseq
    %v150 = vand.u32 %v149, 127
    %v151 = vperm.slane %v138, %v150
    %v152 = vperm.slane %v145, %v150
    %vm153 = vcmask 1041409
    %v154 = vsel %vm153, %v152, %v151
    %vm155 = vcmask 31744
    %v156 = vsel %vm155, %v154, 0
    %v159 = vsel %vm131, %v146, 0
    %161 = vmatpush.msra.mxu0 0.0
    %162 = vmatpush.msra.mxu0 0.0
    %163 = vmatpush.msra.mxu0 0.0
    %164 = vmatpush.msra.mxu0 0.0
    %165 = vmatpush.msra.mxu0 0.0
    %166 = vmatpush.msra.mxu0 0.0
    %167 = vmatpush.msra.mxu0 0.0
    %168 = vmatpush.msra.mxu0 0.0
    %169 = vmatpush.msra.mxu0 0.0
    %170 = vmatpush.msra.mxu0 0.0
    %171 = vmatpush.msra.mxu0 0.0
    %172 = vmatpush.msra.mxu0 0.0
    %173 = vmatpush.msra.mxu0 0.0
    %174 = vmatpush.msra.mxu0 0.0
    %175 = vmatpush.msra.mxu0 0.0
    %176 = vmatpush.msra.mxu0 %v159
    %177 = vmatmul.f32.gmra.mxu0 %v156
    %v178 = vpop.f32.mrf.mxu0
    %v179 = vadd.f32 0.0, %v178
    %180 = vdwg.mxu0
    %v181 = vmul.f32 %v179, 0.0029411765
    %v182 = vld [vmem:[%s2] sm:$0x1]
    %v184 = vperm.slane %v182, 0
    %v186 = vadd.f32 %v181, %v184
    %v187 = vld [vmem:[#allocation7] sm:$0xff]
    %v188 = vperm.slane %v186, 0
    %v189 = vadd.f32 %v187, %v188
    %v190 = vperm.slane %v186, 1
    %v191 = vadd.f32 %v187, %v190
    %v192 = vld [vmem:[#allocation8] sm:$0xff]
    %v193 = vld [vmem:[#allocation8 + $0x8] sm:$0xff]
    %v194 = vld [vmem:[#allocation8 + $0x10] sm:$0xff]
    %v195 = vld [vmem:[#allocation8 + $0x18] sm:$0xff]
    %v196 = vld [vmem:[%s5] sm:$0x1]
    %v198 = vperm.slane %v196, 0
    %vm200 = vcmask 261120
    %v202 = vsel %vm200, %v189, 0
    %v205 = vsel %vm200, %v191, 0
    %v208 = vsel %vm200, %v187, 0
    %210 = vmatpush.msra.mxu0 0.0
    %211 = vmatpush.msra.mxu0 0.0
    %212 = vmatpush.msra.mxu0 0.0
    %213 = vmatpush.msra.mxu0 0.0
    %214 = vmatpush.msra.mxu0 0.0
    %215 = vmatpush.msra.mxu0 0.0
    %216 = vmatpush.msra.mxu0 0.0
    %217 = vmatpush.msra.mxu0 0.0
    %218 = vmatpush.msra.mxu0 0.0
    %219 = vmatpush.msra.mxu0 0.0
    %220 = vmatpush.msra.mxu0 0.0
    %221 = vmatpush.msra.mxu0 0.0
    %222 = vmatpush.msra.mxu0 %v195
    %223 = vmatpush.msra.mxu0 %v194
    %224 = vmatpush.msra.mxu0 %v193
    %225 = vmatpush.msra.mxu0 %v192
    %226 = vmatmul.f32.gmra.mxu0 %v202
    %v227 = vpop.f32.mrf.mxu0
    %v228 = vadd.f32 %v198, %v227
    %229 = vmatmul.f32.gmra.mxu0 %v205
    %v230 = vpop.f32.mrf.mxu0
    %v231 = vadd.f32 %v198, %v230
    %232 = vmatmul.f32.gmra.mxu0 %v208
    %v233 = vpop.f32.mrf.mxu0
    %v234 = vadd.f32 %v198, %v233
    %235 = vdwg.mxu0
    %v236 = vxor.u32 %v234, 2147483648
    %v237 = vmul.f32 %v236, 1.442695
    %v238 = vpow.pop %v237
    %v239 = vadd.f32 %v238, 1.0
    %v240 = vrcp.pop %v239
    %v241 = vmul.f32 %v239, %v240
    %v242 = vsub.f32 1.0, %v241
    %v243 = vmul.f32 %v240, %v242
    %v244 = vadd.f32 %v240, %v243
    %vm245 = vweird.f32 %v239
    %vm246 = vweird.f32 %v240
    %vm247 = vmor %vm245, %vm246
    %v248 = vsel %vm247, %v240, %v244
    %v249 = vand.u32 2147483647, %v239
    %vm250 = vcmp.eq.f32.partialorder %v249, 8.507059e+37
    %v251 = vand.u32 %v239, 2147483648
    %v252 = vor.u32 1.1754944e-38, %v251
    %v253 = vsel %vm250, %v252, %v248
    %v254 = vmul.f32 1.0, %v253
    %v255 = vld [vmem:[%s7] sm:$0x1]
    %v256 = vld [vmem:[#allocation10] sm:$0xf]
    %v257 = vperm.slane %v256, 3
    %259 = vrot.lane.b32.xlu0 %v254, 104
    %v260 = vpop.permute.xlu0 %259
    %vm261 = vcmask 23552
    %v262 = vsel %vm261, %v260, 0
    %vm264 = vcmask 1042432
    %v266 = vsel %vm264, %v256, 0
    %268 = vmatpush.msra.mxu0 0.0
    %269 = vmatpush.msra.mxu0 0.0
    %270 = vmatpush.msra.mxu0 0.0
    %271 = vmatpush.msra.mxu0 0.0
    %272 = vmatpush.msra.mxu0 0.0
    %273 = vmatpush.msra.mxu0 0.0
    %274 = vmatpush.msra.mxu0 0.0
    %275 = vmatpush.msra.mxu0 0.0
    %276 = vmatpush.msra.mxu0 0.0
    %277 = vmatpush.msra.mxu0 0.0
    %278 = vmatpush.msra.mxu0 0.0
    %279 = vmatpush.msra.mxu0 0.0
    %280 = vmatpush.msra.mxu0 0.0
    %281 = vmatpush.msra.mxu0 0.0
    %282 = vmatpush.msra.mxu0 0.0
    %283 = vmatpush.msra.mxu0 %v266
    %284 = vmatmul.f32.gmra.mxu0 %v262
    %v285 = vpop.f32.mrf.mxu0
    %v286 = vadd.f32 %v257, %v285
    %287 = vdwg.mxu0
    %v288 = vmax.f32 %v286, 1e-05
    %v289 = vrcp.pop %v288
    %291 = vset.pattern.permute.xlu0 2
    %292 = vperm.xlu0 %291, %v289
    %v293 = vpop.permute.xlu0 %292
    %v295 = vmul.f32 %v286, %v293
    %v297 = vperm.slane %v255, 0
    %v299 = vmul.f32 %v295, %v297
    %301 = vrot.lane.b32.xlu0 %v299, 24
    %v302 = vpop.permute.xlu0 %301
    %vm304 = vcmask 195584
    %v305 = vsel %vm304, %v228, %v302
    %vm306 = vcmask 211968
    %v307 = vsel %vm306, %v305, 0.0
    %s308 = scalar_lea.vmem [#allocation10], 4
    %v309 = vld [vmem:[%s308] sm:$0xf]
    %v310 = vperm.slane %v309, 3
    %v312 = vsel %vm264, %v309, 0
    %314 = vmatpush.msra.mxu0 0.0
    %315 = vmatpush.msra.mxu0 0.0
    %316 = vmatpush.msra.mxu0 0.0
    %317 = vmatpush.msra.mxu0 0.0
    %318 = vmatpush.msra.mxu0 0.0
    %319 = vmatpush.msra.mxu0 0.0
    %320 = vmatpush.msra.mxu0 0.0
    %321 = vmatpush.msra.mxu0 0.0
    %322 = vmatpush.msra.mxu0 0.0
    %323 = vmatpush.msra.mxu0 0.0
    %324 = vmatpush.msra.mxu0 0.0
    %325 = vmatpush.msra.mxu0 0.0
    %326 = vmatpush.msra.mxu0 0.0
    %327 = vmatpush.msra.mxu0 0.0
    %328 = vmatpush.msra.mxu0 0.0
    %329 = vmatpush.msra.mxu0 %v312
    %330 = vmatmul.f32.gmra.mxu0 %v262
    %v331 = vpop.f32.mrf.mxu0
    %v332 = vadd.f32 %v310, %v331
    %333 = vdwg.mxu0
    %v334 = vmax.f32 %v332, 1e-05
    %v335 = vrcp.pop %v334
    %337 = vset.pattern.permute.xlu0 2
    %338 = vperm.xlu0 %337, %v335
    %v339 = vpop.permute.xlu0 %338
    %v341 = vmul.f32 %v332, %v339
    %v342 = vmul.f32 %v341, %v297
    %344 = vrot.lane.b32.xlu0 %v342, 24
    %v345 = vpop.permute.xlu0 %344
    %v347 = vsel %vm304, %v231, %v345
    %v348 = vsel %vm306, %v347, 0.0
    %349 = vst.msk [vmem:[#allocation11] sm:$0xff] %vm200, %v307
    %350 = vst.msk [vmem:[#allocation11 + $0x8] sm:$0xff] %vm200, %v348
    // Predicated region
    $region54: #{tpu_custom_call.1} parent=1 // pred_check
      _
    $region55: #{tpu_custom_call.1} parent=1 // pred_check_branch
      %352 = sbr.rel (0) target = $region57
    $region56: #{tpu_custom_call.1} parent=1 // pred_region
      %354 = vsyncadd [#allocation4], 0
      %s355 = sshll.u32 [#allocation11], 4
      %s356 = int_to_ptr.vmem [resolvable:$true] %s355
      %s357 = sshll.u32 %s8, 4
      %s358 = int_to_ptr.hbm [resolvable:$true] %s357
      %363 = dma.vmem_to_hbm [thread:$0]  %s356, 256, %s358, [#allocation4], 128, 128, 8
    $region57: #{tpu_custom_call.1} parent=1 // pred_fallthru
      _
    // Predicated region
    $region58: #{tpu_custom_call.1} parent=1 // pred_check
      _
    $region59: #{tpu_custom_call.1} parent=1 // pred_check_branch
      %365 = sbr.rel (0) target = $region61
    $region60: #{tpu_custom_call.1} parent=1 // pred_region
      %367 = dma.done [#allocation4], 256
    $region61: #{tpu_custom_call.1} parent=1 // pred_fallthru
      _
    %368 = vsyncpa [#allocation3], 1
    %369 = vsyncpa [#allocation6], 1
    %370 = vsyncpa [#allocation9], 1
    %371 = vsyncpa [#allocation4], 1

</llo_original>
